<compile_context>
chip_gen: v7x
topology: tpu7x:2x2x1
jax: 0.10.0
libtpu: 0.0.40
codegen_flags: <defaults>
</compile_context>

<pallas_src>
import functools

import jax
import jax.numpy as jnp
from jax import lax
from jax.experimental import pallas as pl
from jax.experimental.pallas import tpu as pltpu


def _round_up(v, m):
    return ((v + m - 1) // m) * m


# ---------------------------------------------------------------------------
# Kernel 1: time-parallel precompute of the x-path of the GCN conv
#     zx[t] = A_hat @ (x[t] @ Wx[t]) + b[t]
# ---------------------------------------------------------------------------
def gcn_xpath_kernel(a_ref, x_ref, wx_ref, b_ref, zx_ref):
    xw = jnp.dot(x_ref[0], wx_ref[0], preferred_element_type=jnp.float32)  # (Np, 4Hp)
    zx_ref[0] = (jnp.dot(a_ref[...], xw, preferred_element_type=jnp.float32)
                 + b_ref[0])


# ---------------------------------------------------------------------------
# Kernel 2: the sequential LSTM recurrence, fully VMEM-resident (no grid).
#     per step:  Ah = A_hat @ h ;  z = zx[t] + Ah @ Wh[t] ;  LSTM gates
# ---------------------------------------------------------------------------
def gconv_lstm_recurrent_kernel(a_ref, zx_ref, wh_ref,
                                out_h_ref, c_final_ref,
                                *, seq_len, hidden_p):
    hp = hidden_p
    a = a_ref[...]                       # (Np, Np), resident for all steps
    n = a.shape[0]

    def step(t, carry):
        h, c = carry
        ah = jnp.dot(a, h, preferred_element_type=jnp.float32)          # (Np, Hp)
        z = zx_ref[t] + jnp.dot(ah, wh_ref[t],
                                preferred_element_type=jnp.float32)     # (Np, 4Hp)
        # fused sigmoid over f/i/o gates; all slices are 128-lane aligned (Hp=128k)
        sig = jax.nn.sigmoid(z[:, :3 * hp])
        f = sig[:, 0 * hp:1 * hp]
        i = sig[:, 1 * hp:2 * hp]
        o = sig[:, 2 * hp:3 * hp]
        g = jnp.tanh(z[:, 3 * hp:4 * hp])
        c_next = f * c + i * g
        h_next = o * jnp.tanh(c_next)
        out_h_ref[t] = h_next            # lane-dense (Np, Hp) store
        return (h_next, c_next)

    h0 = jnp.zeros((n, hp), jnp.float32)
    c0 = jnp.zeros((n, hp), jnp.float32)
    _, c_fin = lax.fori_loop(0, seq_len, step, (h0, c0), unroll=True)
    c_final_ref[...] = c_fin             # single final write


# ---------------------------------------------------------------------------
# Wrapper
# ---------------------------------------------------------------------------
def encoder_forward(x, a_hat, w_full, b):
    """x: (seq_len, N, C_in); a_hat: (N, N);
       w_full: (seq_len, C_in + H, 4H) per-timestep GCNConv weight; b: (seq_len, 4H)."""
    seq_len, N, C_in = x.shape
    H = w_full.shape[-1] // 4
    assert w_full.shape[1] == C_in + H

    # --- pad to TPU-friendly shapes (exact, see header comment) -------------
    Hp = max(128, _round_up(H, 128))     # lane-align every gate block
    Np = _round_up(N, 8)                 # sublane-align node rows

    wx = w_full[:, :C_in, :].reshape(seq_len, C_in, 4, H)
    wh = w_full[:, C_in:, :].reshape(seq_len, H, 4, H)
    b4 = b.reshape(seq_len, 1, 4, H)

    wx_p = jnp.pad(wx, ((0, 0), (0, 0), (0, 0), (0, Hp - H))
                   ).reshape(seq_len, C_in, 4 * Hp)
    wh_p = jnp.pad(wh, ((0, 0), (0, Hp - H), (0, 0), (0, Hp - H))
                   ).reshape(seq_len, Hp, 4 * Hp)
    b_p = jnp.pad(b4, ((0, 0), (0, 0), (0, 0), (0, Hp - H))
                  ).reshape(seq_len, 1, 4 * Hp)
    x_p = jnp.pad(x, ((0, 0), (0, Np - N), (0, 0)))
    a_p = jnp.pad(a_hat, ((0, Np - N), (0, Np - N)))

    # --- hoisted, time-parallel x-path --------------------------------------
    zx = pl.pallas_call(
        gcn_xpath_kernel,
        out_shape=jax.ShapeDtypeStruct((seq_len, Np, 4 * Hp), jnp.float32),
        grid_spec=pltpu.PrefetchScalarGridSpec(
            num_scalar_prefetch=0,
            grid=(seq_len,),
            in_specs=[
                pl.BlockSpec((Np, Np), lambda t: (0, 0)),            # A_hat (resident)
                pl.BlockSpec((1, Np, C_in), lambda t: (t, 0, 0)),    # x[t]
                pl.BlockSpec((1, C_in, 4 * Hp), lambda t: (t, 0, 0)),  # Wx[t]
                pl.BlockSpec((1, 1, 4 * Hp), lambda t: (t, 0, 0)),   # b[t]
            ],
            out_specs=pl.BlockSpec((1, Np, 4 * Hp), lambda t: (t, 0, 0)),
        ),
        compiler_params=pltpu.CompilerParams(
            dimension_semantics=("parallel",),
            vmem_limit_bytes=32 * 1024 * 1024),
    )(a_p, x_p, wx_p, b_p)

    # --- sequential recurrence: one grid-less call, everything VMEM-resident -
    # TODO(synk): for large seq_len*N*Hp exceeding VMEM, switch to a
    # grid=(seq_len,) "arbitrary" pipeline streaming zx[t]/Wh[t] per step.
    kernel = functools.partial(gconv_lstm_recurrent_kernel,
                               seq_len=seq_len, hidden_p=Hp)
    out_h_p, c_final_p = pl.pallas_call(
        kernel,
        out_shape=(jax.ShapeDtypeStruct((seq_len, Np, Hp), jnp.float32),
                   jax.ShapeDtypeStruct((Np, Hp), jnp.float32)),
        compiler_params=pltpu.CompilerParams(
            vmem_limit_bytes=32 * 1024 * 1024),
    )(a_p, zx, wh_p)

    out_h = out_h_p[:, :N, :H]
    h_final = out_h[-1]
    c_final = c_final_p[:N, :H]
    return out_h, (h_final, c_final)


# ---------------------------------------------------------------------------
# Plain-JAX glue: dense GCN normalization (self loops + sym norm), reference
# ---------------------------------------------------------------------------
def build_gcn_norm_dense(edge_index, num_nodes, edge_weight=None):
    row, col = edge_index[0], edge_index[1]          # source, target
    if edge_weight is None:
        edge_weight = jnp.ones(row.shape[0], dtype=jnp.float32)
    loop = jnp.arange(num_nodes, dtype=row.dtype)
    row = jnp.concatenate([row, loop])
    col = jnp.concatenate([col, loop])
    ew = jnp.concatenate([edge_weight, jnp.ones(num_nodes, dtype=jnp.float32)])
    deg = jnp.zeros(num_nodes, jnp.float32).at[col].add(ew)
    dinv = jnp.where(deg > 0, 1.0 / jnp.sqrt(deg), 0.0)
    norm = dinv[row] * ew * dinv[col]
    a = jnp.zeros((num_nodes, num_nodes), jnp.float32).at[col, row].add(norm)
    return a


def encoder_reference(x, a_hat, w_full, b):
    """Pure-JAX reference matching the PyTorch Encoder forward semantics."""
    seq_len, N, _ = x.shape
    H = w_full.shape[-1] // 4
    h = jnp.zeros((N, H), jnp.float32)
    c = jnp.zeros((N, H), jnp.float32)
    outs = []
    for t in range(seq_len):
        combined = jnp.concatenate([x[t], h], axis=1)
        z = a_hat @ (combined @ w_full[t]) + b[t][None, :]
        f = jax.nn.sigmoid(z[:, 0 * H:1 * H])
        i = jax.nn.sigmoid(z[:, 1 * H:2 * H])
        o = jax.nn.sigmoid(z[:, 2 * H:3 * H])
        g = jnp.tanh(z[:, 3 * H:4 * H])
        c = f * c + i * g
        h = o * jnp.tanh(c)
        outs.append(h)
    return jnp.stack(outs, axis=0), (h, c)


if __name__ == "__main__":
    seq_len = 4
    num_nodes = 16
    input_channels = 4
    hidden_channels = 32

    key = jax.random.PRNGKey(0)
    k_x, k_w, k_b, k_ew = jax.random.split(key, 4)

    # sequence of node features: (seq_len, num_nodes, input_channels)
    x = jax.random.normal(k_x, (seq_len, num_nodes, input_channels),
                          dtype=jnp.float32)

    # ring graph, both directions: edge_index shape (2, 2*num_nodes)
    src = jnp.arange(num_nodes, dtype=jnp.int32)
    dst = (src + 1) % num_nodes
    edge_index = jnp.stack([jnp.concatenate([src, dst]),
                            jnp.concatenate([dst, src])], axis=0)
    edge_weight = jnp.abs(
        jax.random.normal(k_ew, (edge_index.shape[1],), dtype=jnp.float32)) + 0.5

    a_hat = build_gcn_norm_dense(edge_index, num_nodes, edge_weight)

    # Per-timestep GCNConv weights: W in R^{(C_in+H) x 4H}, small random bias.
    w_full = 0.1 * jax.random.normal(
        k_w, (seq_len, input_channels + hidden_channels, 4 * hidden_channels),
        dtype=jnp.float32)
    b = 0.05 * jax.random.normal(
        k_b, (seq_len, 4 * hidden_channels), dtype=jnp.float32)

    out, (h_final, c_final) = encoder_forward(x, a_hat, w_full, b)
    jax.block_until_ready((out, h_final, c_final))

    ref_out, (ref_h, ref_c) = encoder_reference(x, a_hat, w_full, b)
    assert jnp.allclose(out, ref_out, rtol=1e-4, atol=1e-4)
    assert jnp.allclose(h_final, ref_h, rtol=1e-4, atol=1e-4)
    assert jnp.allclose(c_final, ref_c, rtol=1e-4, atol=1e-4)

    print("KERNEL_OK")
</pallas_src>

<mosaic_0001>
module attributes {stable_mosaic.version = 11 : i64} {
  func.func @gcn_xpath_kernel(%arg0: i32, %arg1: memref<16x16xf32, #tpu.memory_space<vmem>>, %arg2: memref<1x16x4xf32, #tpu.memory_space<vmem>>, %arg3: memref<1x4x512xf32, #tpu.memory_space<vmem>>, %arg4: memref<1x1x512xf32, #tpu.memory_space<vmem>>, %arg5: memref<1x16x512xf32, #tpu.memory_space<vmem>>) attributes {dimension_semantics = [#tpu.dimension_semantics<parallel>], iteration_bounds = array<i64: 4>, scalar_prefetch = 0 : i64, scratch_operands = 0 : i64, tpu.core_type = #tpu.core_type<tc>, window_params = [{pipeline_mode = #tpu.pipeline_mode<synchronous>, transform_indices = @transform_0, window_bounds = array<i64: 16, 16>}, {transform_indices = @transform_1, window_bounds = array<i64: 1, 16, 4>}, {transform_indices = @transform_2, window_bounds = array<i64: 1, 4, 512>}, {transform_indices = @transform_3, window_bounds = array<i64: 1, 1, 512>}, {transform_indices = @transform_4, window_bounds = array<i64: 1, 16, 512>}]} {
    %c0 = arith.constant 0 : index
    %c0_0 = arith.constant 0 : index
    %c0_1 = arith.constant 0 : index
    %0 = vector.load %arg2[%c0, %c0_0, %c0_1] : memref<1x16x4xf32, #tpu.memory_space<vmem>>, vector<1x16x4xf32>
    %1 = vector.shape_cast %0 : vector<1x16x4xf32> to vector<16x4xf32>
    %c0_2 = arith.constant 0 : index
    %c0_3 = arith.constant 0 : index
    %c0_4 = arith.constant 0 : index
    %2 = vector.load %arg3[%c0_2, %c0_3, %c0_4] : memref<1x4x512xf32, #tpu.memory_space<vmem>>, vector<1x4x512xf32>
    %3 = vector.shape_cast %2 : vector<1x4x512xf32> to vector<4x512xf32>
    %cst = arith.constant dense<0.000000e+00> : vector<16x512xf32>
    %4 = tpu.matmul %1, %3, %cst {dimension_numbers = #tpu.dot_dimension_numbers<[1], [0], [0], [1], [0, 0, 1, 1], [], []>} : vector<16x4xf32>, vector<4x512xf32>, vector<16x512xf32> -> vector<16x512xf32>
    %c0_5 = arith.constant 0 : index
    %c0_6 = arith.constant 0 : index
    %5 = vector.load %arg1[%c0_5, %c0_6] : memref<16x16xf32, #tpu.memory_space<vmem>>, vector<16x16xf32>
    %cst_7 = arith.constant dense<0.000000e+00> : vector<16x512xf32>
    %6 = tpu.matmul %5, %4, %cst_7 {dimension_numbers = #tpu.dot_dimension_numbers<[1], [0], [0], [1], [0, 0, 1, 1], [], []>} : vector<16x16xf32>, vector<16x512xf32>, vector<16x512xf32> -> vector<16x512xf32>
    %c0_8 = arith.constant 0 : index
    %c0_9 = arith.constant 0 : index
    %c0_10 = arith.constant 0 : index
    %7 = vector.load %arg4[%c0_8, %c0_9, %c0_10] : memref<1x1x512xf32, #tpu.memory_space<vmem>>, vector<1x1x512xf32>
    %8 = vector.shape_cast %7 : vector<1x1x512xf32> to vector<1x512xf32>
    %9 = vector.broadcast %8 : vector<1x512xf32> to vector<16x512xf32>
    %10 = arith.addf %6, %9 : vector<16x512xf32>
    %c0_11 = arith.constant 0 : index
    %c0_12 = arith.constant 0 : index
    %c0_13 = arith.constant 0 : index
    %11 = vector.load %arg5[%c0_11, %c0_12, %c0_13] : memref<1x16x512xf32, #tpu.memory_space<vmem>>, vector<1x16x512xf32>
    %12 = vector.shape_cast %11 : vector<1x16x512xf32> to vector<16x512xf32>
    %13 = vector.shape_cast %10 : vector<16x512xf32> to vector<1x16x512xf32>
    tpu.vector_store %arg5[%c0_11, %c0_12, %c0_13], %13 {strides = array<i32>} : memref<1x16x512xf32, #tpu.memory_space<vmem>>, vector<1x16x512xf32>,
    return
  }
  func.func @transform_0(%arg0: i32) -> (i32, i32) {
    %c0_i32 = arith.constant 0 : i32
    %c0_i32_0 = arith.constant 0 : i32
    %c0_i32_1 = arith.constant 0 : i32
    return %c0_i32, %c0_i32_0 : i32, i32
  }
  func.func @transform_1(%arg0: i32) -> (i32, i32, i32) {
    %c0_i32 = arith.constant 0 : i32
    %c0_i32_0 = arith.constant 0 : i32
    %c0_i32_1 = arith.constant 0 : i32
    return %arg0, %c0_i32, %c0_i32_0 : i32, i32, i32
  }
  func.func @transform_2(%arg0: i32) -> (i32, i32, i32) {
    %c0_i32 = arith.constant 0 : i32
    %c0_i32_0 = arith.constant 0 : i32
    %c0_i32_1 = arith.constant 0 : i32
    return %arg0, %c0_i32, %c0_i32_0 : i32, i32, i32
  }
  func.func @transform_3(%arg0: i32) -> (i32, i32, i32) {
    %c0_i32 = arith.constant 0 : i32
    %c0_i32_0 = arith.constant 0 : i32
    %c0_i32_1 = arith.constant 0 : i32
    return %arg0, %c0_i32, %c0_i32_0 : i32, i32, i32
  }
  func.func @transform_4(%arg0: i32) -> (i32, i32, i32) {
    %c0_i32 = arith.constant 0 : i32
    %c0_i32_0 = arith.constant 0 : i32
    %c0_i32_1 = arith.constant 0 : i32
    return %arg0, %c0_i32, %c0_i32_0 : i32, i32, i32
  }
}

</mosaic_0001>

<llo_original>
// kernel: tpu_custom_call.1
$region0: #{tpu_custom_call.1}
  #allocation0 [shape = 'u32[]', space=smem, size = 0x4, offset = 0x4, fixed_abs, tag = 'smem constant byte address 0x4 - core index']
  #allocation1 [shape = 'u32[144,128]{1,0:T(1,128)}', space=vmem, size = 0x12000, scoped, tag = 'internal scratch']
  %s0 = inlined_call_operand.vmem [shape: f32[16,16], index: 0, kind: input, shape index: {}]
  %s1 = inlined_call_operand.vmem [shape: f32[4,16,4], index: 1, kind: input, shape index: {}]
  %s2 = inlined_call_operand.vmem [shape: f32[4,4,512], index: 2, kind: input, shape index: {}]
  %s3 = inlined_call_operand.hbm [shape: f32[4,1,512], index: 3, kind: input, shape index: {}]
  %s4 = inlined_call_operand.hbm [shape: f32[4,16,512], index: 4, kind: output, shape index: {}]
  %s5 = sld [smem:[#allocation0]]
  $region53: #{tpu_custom_call.1} parent=0
    _
  %s7 = ssub.s32 1, %s5
  %s8 = scalar_select 0, %s7, %s5
  $region1: #{tpu_custom_call.1} parent=0
    #allocation2 [shape = 'u8[4096]{0}', space=vmem, size = 0x1000, scoped, tag = 'input window, operand 3']
    #allocation3 [shape = 's32[2]{0}', space=sflag, size = 0x8, scoped, tag = 'scoped memory for tpu_custom_call.1']
    #allocation4 [shape = 's32[2]{0}', space=sflag, size = 0x8, scoped, tag = 'scoped memory for tpu_custom_call.1']
    #allocation5 [shape = 'u8[65536]{0}', space=vmem, size = 0x10000, scoped, tag = 'output window, operand 0']
    %9 = vsyncpa [#allocation3], 0
    %s10 = scalar_lea.sflag [#allocation3], 1
    %11 = vsyncpa %s10, 0
    %12 = vsyncpa [#allocation4], 0
    %s13 = scalar_lea.sflag [#allocation4], 1
    %14 = vsyncpa %s13, 0
    loop: start=0, step=1, limit=6
    $region2: #{tpu_custom_call.1} parent=1 // loop_pre_header
      _
    $region3: #{tpu_custom_call.1} parent=1 // loop_header
      %s16 = sphi 0, %s20
      %p17 = scmp.ge.s32.totalorder %s16, 6
      %s24 = sphi 0, %s24
      %s26 = sphi 0, %s24
      %s27 = sphi 0, %s26
      %s41 = sphi 0, %s27
      %s47 = sphi 0, %s49
      %s50 = sphi 0, %s47
      %s51 = sphi 0, %s50
      %s67 = sphi 0, %s51
      %s73 = sphi 0, %s75
      %s76 = sphi 0, %s73
      %s77 = sphi 0, %s76
      %s93 = sphi 0, %s77
      %s99 = sphi 0, %s101
      %s102 = sphi 0, %s99
      %s103 = sphi 0, %s102
      %s119 = sphi 0, %s103
      %s125 = sphi 0, %s127
      %s128 = sphi 0, %s125
      %s129 = sphi 0, %s128
      %s145 = sphi 0, %s129
    $region4: #{tpu_custom_call.1} parent=1 // loop_header_branch
      %19 = sbr.rel (%p17) target = $region8
    $region5: #{tpu_custom_call.1} parent=1 // loop_body
      %s21 = ssub.s32 %s16, 1
      %s22 = ssub.s32 %s16, 2
      %s23 = sadd.s32 %s16, 1
      %s25 = sadd.s32 %s24, 1
      %p28 = scmp.eq.s32.totalorder %s16, 3
      %p29 = scmp.ne.s32.totalorder %s24, %s26
      %p30 = scmp.eq.s32.totalorder %s16, 0
      %p31 = por %p29, %p30
      %p32 = scmp.ne.s32.totalorder %s24, %s26
      %p33 = scmp.eq.s32.totalorder %s21, 3
      %p34 = por %p32, %p33
      %p35 = scmp.ne.s32.totalorder %s26, %s27
      %p36 = scmp.eq.s32.totalorder %s21, 0
      %p37 = por %p35, %p36
      %p38 = scmp.ne.s32.totalorder %s26, %s27
      %p39 = scmp.eq.s32.totalorder %s22, 3
      %p40 = por %p38, %p39
      %p42 = scmp.ne.s32.totalorder %s27, %s41
      %p43 = scmp.eq.s32.totalorder %s22, 0
      %p44 = por %p42, %p43
      %s45 = ssub.s32 %s16, %s23
      %p46 = scmp.eq.s32.totalorder %s45, 0
      %s48 = sadd.s32 %s47, 1
      %s49 = scalar_select %p46, %s47, %s48
      %p52 = pneg %p46
      %p53 = scmp.eq.s32.totalorder %s16, 3
      %p54 = por %p52, %p53
      %p55 = scmp.ne.s32.totalorder %s47, %s50
      %p56 = scmp.eq.s32.totalorder %s16, 0
      %p57 = por %p55, %p56
      %p58 = scmp.ne.s32.totalorder %s47, %s50
      %p59 = scmp.eq.s32.totalorder %s21, 3
      %p60 = por %p58, %p59
      %p61 = scmp.ne.s32.totalorder %s50, %s51
      %p62 = scmp.eq.s32.totalorder %s21, 0
      %p63 = por %p61, %p62
      %p64 = scmp.ne.s32.totalorder %s50, %s51
      %p65 = scmp.eq.s32.totalorder %s22, 3
      %p66 = por %p64, %p65
      %p68 = scmp.ne.s32.totalorder %s51, %s67
      %p69 = scmp.eq.s32.totalorder %s22, 0
      %p70 = por %p68, %p69
      %s71 = ssub.s32 %s16, %s23
      %p72 = scmp.eq.s32.totalorder %s71, 0
      %s74 = sadd.s32 %s73, 1
      %s75 = scalar_select %p72, %s73, %s74
      %p78 = pneg %p72
      %p79 = scmp.eq.s32.totalorder %s16, 3
      %p80 = por %p78, %p79
      %p81 = scmp.ne.s32.totalorder %s73, %s76
      %p82 = scmp.eq.s32.totalorder %s16, 0
      %p83 = por %p81, %p82
      %p84 = scmp.ne.s32.totalorder %s73, %s76
      %p85 = scmp.eq.s32.totalorder %s21, 3
      %p86 = por %p84, %p85
      %p87 = scmp.ne.s32.totalorder %s76, %s77
      %p88 = scmp.eq.s32.totalorder %s21, 0
      %p89 = por %p87, %p88
      %p90 = scmp.ne.s32.totalorder %s76, %s77
      %p91 = scmp.eq.s32.totalorder %s22, 3
      %p92 = por %p90, %p91
      %p94 = scmp.ne.s32.totalorder %s77, %s93
      %p95 = scmp.eq.s32.totalorder %s22, 0
      %p96 = por %p94, %p95
      %s97 = ssub.s32 %s16, %s23
      %p98 = scmp.eq.s32.totalorder %s97, 0
      %s100 = sadd.s32 %s99, 1
      %s101 = scalar_select %p98, %s99, %s100
      %p104 = pneg %p98
      %p105 = scmp.eq.s32.totalorder %s16, 3
      %p106 = por %p104, %p105
      %p107 = scmp.ne.s32.totalorder %s99, %s102
      %p108 = scmp.eq.s32.totalorder %s16, 0
      %p109 = por %p107, %p108
      %p110 = scmp.ne.s32.totalorder %s99, %s102
      %p111 = scmp.eq.s32.totalorder %s21, 3
      %p112 = por %p110, %p111
      %p113 = scmp.ne.s32.totalorder %s102, %s103
      %p114 = scmp.eq.s32.totalorder %s21, 0
      %p115 = por %p113, %p114
      %p116 = scmp.ne.s32.totalorder %s102, %s103
      %p117 = scmp.eq.s32.totalorder %s22, 3
      %p118 = por %p116, %p117
      %p120 = scmp.ne.s32.totalorder %s103, %s119
      %p121 = scmp.eq.s32.totalorder %s22, 0
      %p122 = por %p120, %p121
      %s123 = ssub.s32 %s16, %s23
      %p124 = scmp.eq.s32.totalorder %s123, 0
      %s126 = sadd.s32 %s125, 1
      %s127 = scalar_select %p124, %s125, %s126
      %p130 = pneg %p124
      %p131 = scmp.eq.s32.totalorder %s16, 3
      %p132 = por %p130, %p131
      %p133 = scmp.ne.s32.totalorder %s125, %s128
      %p134 = scmp.eq.s32.totalorder %s16, 0
      %p135 = por %p133, %p134
      %p136 = scmp.ne.s32.totalorder %s125, %s128
      %p137 = scmp.eq.s32.totalorder %s21, 3
      %p138 = por %p136, %p137
      %p139 = scmp.ne.s32.totalorder %s128, %s129
      %p140 = scmp.eq.s32.totalorder %s21, 0
      %p141 = por %p139, %p140
      %p142 = scmp.ne.s32.totalorder %s128, %s129
      %p143 = scmp.eq.s32.totalorder %s22, 3
      %p144 = por %p142, %p143
      %p146 = scmp.ne.s32.totalorder %s129, %s145
      %p147 = scmp.eq.s32.totalorder %s22, 0
      %p148 = por %p146, %p147
      %p149 = scmp.le.s32.totalorder 1, %s16
      %p150 = scmp.lt.s32.totalorder %s16, 5
      %p151 = pnand %p149, %p150
      %p152 = pneg %p151
      // Predicated region
      $region9: #{tpu_custom_call.1} parent=5 // pred_check
        _
      $region10: #{tpu_custom_call.1} parent=5 // pred_check_branch
        %154 = sbr.rel (%p151) target = $region12
      $region11: #{tpu_custom_call.1} parent=5 // pred_region
        %s155 = ssub.s32 %s16, 1
        // Predicated region
        $region13: #{tpu_custom_call.1} parent=11 // pred_check
          %p156 = pneg %p37
        $region14: #{tpu_custom_call.1} parent=11 // pred_check_branch
          %158 = sbr.rel (%p156) target = $region16
        $region15: #{tpu_custom_call.1} parent=11 // pred_region
          _
        $region16: #{tpu_custom_call.1} parent=11 // pred_fallthru
          _
      $region12: #{tpu_custom_call.1} parent=5 // pred_fallthru
        _
      %p159 = scmp.lt.s32.totalorder %s16, 4
      // Predicated region
      $region17: #{tpu_custom_call.1} parent=5 // pred_check
        %p160 = pneg %p159
      $region18: #{tpu_custom_call.1} parent=5 // pred_check_branch
        %162 = sbr.rel (%p160) target = $region20
      $region19: #{tpu_custom_call.1} parent=5 // pred_region
        // Predicated region
        $region21: #{tpu_custom_call.1} parent=19 // pred_check
          %p163 = pneg %p57
        $region22: #{tpu_custom_call.1} parent=19 // pred_check_branch
          %165 = sbr.rel (%p163) target = $region24
        $region23: #{tpu_custom_call.1} parent=19 // pred_region
          %p166 = scmp.lt.s32.totalorder %s16, 3
          %s167 = scalar_select %p166, %s16, 3
          %s168 = smul.addr %s167, 2
          %s169 = smul.addr %s168, 8
          %s170 = scalar_lea.vmem %s1, %s169
        $region24: #{tpu_custom_call.1} parent=19 // pred_fallthru
          _
        // Predicated region
        $region25: #{tpu_custom_call.1} parent=19 // pred_check
          %p171 = pneg %p83
        $region26: #{tpu_custom_call.1} parent=19 // pred_check_branch
          %173 = sbr.rel (%p171) target = $region28
        $region27: #{tpu_custom_call.1} parent=19 // pred_region
          %p174 = scmp.lt.s32.totalorder %s16, 3
          %s175 = scalar_select %p174, %s16, 3
          %s176 = smul.addr %s175, 4
          %s177 = smul.addr %s176, 4
          %s178 = scalar_lea.vmem %s2, %s177
        $region28: #{tpu_custom_call.1} parent=19 // pred_fallthru
          _
        // Predicated region
        $region29: #{tpu_custom_call.1} parent=19 // pred_check
          %p179 = pneg %p109
        $region30: #{tpu_custom_call.1} parent=19 // pred_check_branch
          %181 = sbr.rel (%p179) target = $region32
        $region31: #{tpu_custom_call.1} parent=19 // pred_region
          %s182 = sand.u32 %s99, 1
          %s183 = scalar_lea.sflag [#allocation3], %s182
          %s184 = sand.u32 %s99, 1
          %s185 = smul.addr %s184, 4
          %s186 = scalar_lea.vmem [#allocation2], %s185
          %s188 = ssub.s32 64, 64
          %189 = vsyncadd %s183, %s188
          %s190 = smul.addr %s16, 4
          %s191 = smul.addr %s190, 16
          %s192 = scalar_lea.hbm %s3, %s191
          %s194 = sshll.u32 %s186, 4
          %s195 = int_to_ptr.vmem [resolvable:$true] %s194
          %197 = dma.hbm_to_vmem [thread:$0]  %s192, 64, %s195, %s183
        $region32: #{tpu_custom_call.1} parent=19 // pred_fallthru
          _
      $region20: #{tpu_custom_call.1} parent=5 // pred_fallthru
        _
      %p198 = scmp.le.s32.totalorder 1, %s16
      %p199 = scmp.lt.s32.totalorder %s16, 5
      %p200 = pnand %p198, %p199
      %p201 = pneg %p200
      // Predicated region
      $region33: #{tpu_custom_call.1} parent=5 // pred_check
        _
      $region34: #{tpu_custom_call.1} parent=5 // pred_check_branch
        %203 = sbr.rel (%p200) target = $region36
      $region35: #{tpu_custom_call.1} parent=5 // pred_region
        %s204 = ssub.s32 %s16, 1
        %s205 = sand.u32 %s102, 1
        %s206 = scalar_lea.sflag [#allocation3], %s205
        %s207 = sand.u32 %s102, 1
        %s208 = smul.addr %s207, 4
        %s209 = scalar_lea.vmem [#allocation2], %s208
        // Predicated region
        $region37: #{tpu_custom_call.1} parent=35 // pred_check
          %p210 = pneg %p115
        $region38: #{tpu_custom_call.1} parent=35 // pred_check_branch
          %212 = sbr.rel (%p210) target = $region40
        $region39: #{tpu_custom_call.1} parent=35 // pred_region
          %213 = dma.done %s206, 64
        $region40: #{tpu_custom_call.1} parent=35 // pred_fallthru
          _
        %p214 = pneg %p37
        %p215 = pneg %p34
        %p216 = scmp.lt.s32.totalorder %s21, 3
        %s217 = scalar_select %p216, %s21, 3
        %s218 = smul.addr %s217, 2
        %s219 = smul.addr %s218, 8
        %s220 = scalar_lea.vmem %s1, %s219
        %p221 = pneg %p63
        %p222 = pneg %p60
        %p223 = scmp.lt.s32.totalorder %s21, 3
        %s224 = scalar_select %p223, %s21, 3
        %s225 = smul.addr %s224, 4
        %s226 = smul.addr %s225, 4
        %s227 = scalar_lea.vmem %s2, %s226
        %p228 = pneg %p89
        %p229 = pneg %p86
        %s230 = sand.u32 %s102, 1
        %s231 = scalar_lea.sflag [#allocation3], %s230
        %s232 = sand.u32 %s102, 1
        %s233 = smul.addr %s232, 4
        %s234 = scalar_lea.vmem [#allocation2], %s233
        %p235 = pneg %p115
        %p236 = pneg %p112
        %p237 = pneg %p141
        %p238 = pneg %p138
        %s239 = sand.u32 %s128, 1
        %s240 = scalar_lea.sflag [#allocation4], %s239
        %s241 = sand.u32 %s128, 1
        %s242 = smul.addr %s241, 64
        %s243 = scalar_lea.vmem [#allocation5], %s242
        %p244 = scmp.lt.s32.totalorder %s21, 3
        %s245 = scalar_select %p244, %s21, 3
        %s246 = smul.addr %s245, 2
        %s247 = smul.addr %s246, 8
        %s248 = scalar_lea.vmem %s1, %s247
        %p249 = scmp.lt.s32.totalorder %s21, 3
        %s250 = scalar_select %p249, %s21, 3
        %s251 = smul.addr %s250, 4
        %s252 = smul.addr %s251, 4
        %s253 = scalar_lea.vmem %s2, %s252
        %v254 = vld [vmem:[%s248] sm:$0xff]
        %v255 = vld [vmem:[%s248 + $0x8] sm:$0xff]
        %v256 = vld [vmem:[%s253] sm:$0xff]
        %v257 = vld [vmem:[%s253 + $0x8] sm:$0xff]
        %v260 = vcombine.high %v256, %v256
        %v261 = vcombine.high %v257, %v257
        %vm262 = vcmask 31744
        %v264 = vsel %vm262, %v254, 0
        %v267 = vsel %vm262, %v255, 0
        %vm269 = vcmask 1043456
        %v270 = vsel %vm269, %v256, 0
        %v272 = vsel %vm269, %v260, 0
        %v274 = vsel %vm269, %v257, 0
        %v276 = vsel %vm269, %v261, 0
        %278 = vmatprep.subr.mxu0 %v272
        %279 = vmatpush1.msra.mxu0 %v270
        %280 = vmatprep.subr.mxu0 0.0
        %281 = vmatpush1.msra.mxu0 0.0
        %282 = vmatprep.subr.mxu0 0.0
        %283 = vmatpush1.msra.mxu0 0.0
        %284 = vmatprep.subr.mxu0 0.0
        %285 = vmatpush1.msra.mxu0 0.0
        %286 = vmatprep.subr.mxu0 0.0
        %287 = vmatpush1.msra.mxu0 0.0
        %288 = vmatprep.subr.mxu0 0.0
        %289 = vmatpush1.msra.mxu0 0.0
        %290 = vmatprep.subr.mxu0 0.0
        %291 = vmatpush1.msra.mxu0 0.0
        %292 = vmatprep.subr.mxu0 0.0
        %293 = vmatpush1.msra.mxu0 0.0
        %294 = vmatprep.subr.mxu0 0.0
        %295 = vmatpush1.msra.mxu0 0.0
        %296 = vmatprep.subr.mxu0 0.0
        %297 = vmatpush1.msra.mxu0 0.0
        %298 = vmatprep.subr.mxu0 0.0
        %299 = vmatpush1.msra.mxu0 0.0
        %300 = vmatprep.subr.mxu0 0.0
        %301 = vmatpush1.msra.mxu0 0.0
        %302 = vmatprep.subr.mxu0 0.0
        %303 = vmatpush1.msra.mxu0 0.0
        %304 = vmatprep.subr.mxu0 0.0
        %305 = vmatpush1.msra.mxu0 0.0
        %306 = vmatprep.subr.mxu0 0.0
        %307 = vmatpush1.msra.mxu0 0.0
        %308 = vmatprep.subr.mxu0 0.0
        %309 = vmatpush1.msra.mxu0 0.0
        %310 = vmatprep.subr.mxu0 0.0
        %311 = vmatpush1.msra.mxu0 0.0
        %312 = vmatprep.subr.mxu0 0.0
        %313 = vmatpush1.msra.mxu0 0.0
        %314 = vmatprep.subr.mxu0 0.0
        %315 = vmatpush1.msra.mxu0 0.0
        %316 = vmatprep.subr.mxu0 0.0
        %317 = vmatpush1.msra.mxu0 0.0
        %318 = vmatprep.subr.mxu0 0.0
        %319 = vmatpush1.msra.mxu0 0.0
        %320 = vmatprep.subr.mxu0 0.0
        %321 = vmatpush1.msra.mxu0 0.0
        %322 = vmatprep.subr.mxu0 0.0
        %323 = vmatpush1.msra.mxu0 0.0
        %324 = vmatprep.subr.mxu0 0.0
        %325 = vmatpush1.msra.mxu0 0.0
        %326 = vmatprep.subr.mxu0 0.0
        %327 = vmatpush1.msra.mxu0 0.0
        %328 = vmatprep.subr.mxu0 0.0
        %329 = vmatpush1.msra.mxu0 0.0
        %330 = vmatprep.subr.mxu0 0.0
        %331 = vmatpush1.msra.mxu0 0.0
        %332 = vmatprep.subr.mxu0 0.0
        %333 = vmatpush1.msra.mxu0 0.0
        %334 = vmatprep.subr.mxu0 0.0
        %335 = vmatpush1.msra.mxu0 0.0
        %336 = vmatprep.subr.mxu0 0.0
        %337 = vmatpush1.msra.mxu0 0.0
        %338 = vmatprep.subr.mxu0 0.0
        %339 = vmatpush1.msra.mxu0 0.0
        %340 = vmatprep.subr.mxu0 0.0
        %341 = vmatpush1.msra.mxu0 0.0
        %342 = vmatprep.mubr.f32.mxu0 0.0
        %343 = vmatmul.mubr.f32.gmra.mrb[0].mxu0 %v264
        %v344 = vpop.f32.mrb[0].mxu0
        %v345 = vadd.f32 0.0, %v344
        %v346 = vpop.f32.mrb[0].mxu0
        %v347 = vadd.f32 0.0, %v346
        %348 = vmatprep.mubr.f32.mxu0 0.0
        %349 = vmatmul.mubr.f32.gmra.mrb[0].mxu0 %v267
        %v350 = vpop.f32.mrb[0].mxu0
        %v351 = vadd.f32 0.0, %v350
        %v352 = vpop.f32.mrb[0].mxu0
        %v353 = vadd.f32 0.0, %v352
        %354 = vdwg.mxu0
        %355 = vmatprep.subr.mxu0 %v276
        %356 = vmatpush1.msra.mxu0 %v274
        %357 = vmatprep.subr.mxu0 0.0
        %358 = vmatpush1.msra.mxu0 0.0
        %359 = vmatprep.subr.mxu0 0.0
        %360 = vmatpush1.msra.mxu0 0.0
        %361 = vmatprep.subr.mxu0 0.0
        %362 = vmatpush1.msra.mxu0 0.0
        %363 = vmatprep.subr.mxu0 0.0
        %364 = vmatpush1.msra.mxu0 0.0
        %365 = vmatprep.subr.mxu0 0.0
        %366 = vmatpush1.msra.mxu0 0.0
        %367 = vmatprep.subr.mxu0 0.0
        %368 = vmatpush1.msra.mxu0 0.0
        %369 = vmatprep.subr.mxu0 0.0
        %370 = vmatpush1.msra.mxu0 0.0
        %371 = vmatprep.subr.mxu0 0.0
        %372 = vmatpush1.msra.mxu0 0.0
        %373 = vmatprep.subr.mxu0 0.0
        %374 = vmatpush1.msra.mxu0 0.0
        %375 = vmatprep.subr.mxu0 0.0
        %376 = vmatpush1.msra.mxu0 0.0
        %377 = vmatprep.subr.mxu0 0.0
        %378 = vmatpush1.msra.mxu0 0.0
        %379 = vmatprep.subr.mxu0 0.0
        %380 = vmatpush1.msra.mxu0 0.0
        %381 = vmatprep.subr.mxu0 0.0
        %382 = vmatpush1.msra.mxu0 0.0
        %383 = vmatprep.subr.mxu0 0.0
        %384 = vmatpush1.msra.mxu0 0.0
        %385 = vmatprep.subr.mxu0 0.0
        %386 = vmatpush1.msra.mxu0 0.0
        %387 = vmatprep.subr.mxu0 0.0
        %388 = vmatpush1.msra.mxu0 0.0
        %389 = vmatprep.subr.mxu0 0.0
        %390 = vmatpush1.msra.mxu0 0.0
        %391 = vmatprep.subr.mxu0 0.0
        %392 = vmatpush1.msra.mxu0 0.0
        %393 = vmatprep.subr.mxu0 0.0
        %394 = vmatpush1.msra.mxu0 0.0
        %395 = vmatprep.subr.mxu0 0.0
        %396 = vmatpush1.msra.mxu0 0.0
        %397 = vmatprep.subr.mxu0 0.0
        %398 = vmatpush1.msra.mxu0 0.0
        %399 = vmatprep.subr.mxu0 0.0
        %400 = vmatpush1.msra.mxu0 0.0
        %401 = vmatprep.subr.mxu0 0.0
        %402 = vmatpush1.msra.mxu0 0.0
        %403 = vmatprep.subr.mxu0 0.0
        %404 = vmatpush1.msra.mxu0 0.0
        %405 = vmatprep.subr.mxu0 0.0
        %406 = vmatpush1.msra.mxu0 0.0
        %407 = vmatprep.subr.mxu0 0.0
        %408 = vmatpush1.msra.mxu0 0.0
        %409 = vmatprep.subr.mxu0 0.0
        %410 = vmatpush1.msra.mxu0 0.0
        %411 = vmatprep.subr.mxu0 0.0
        %412 = vmatpush1.msra.mxu0 0.0
        %413 = vmatprep.subr.mxu0 0.0
        %414 = vmatpush1.msra.mxu0 0.0
        %415 = vmatprep.subr.mxu0 0.0
        %416 = vmatpush1.msra.mxu0 0.0
        %417 = vmatprep.subr.mxu0 0.0
        %418 = vmatpush1.msra.mxu0 0.0
        %419 = vmatprep.mubr.f32.mxu0 0.0
        %420 = vmatmul.mubr.f32.gmra.mrb[0].mxu0 %v264
        %v421 = vpop.f32.mrb[0].mxu0
        %v422 = vadd.f32 0.0, %v421
        %v423 = vpop.f32.mrb[0].mxu0
        %v424 = vadd.f32 0.0, %v423
        %425 = vmatprep.mubr.f32.mxu0 0.0
        %426 = vmatmul.mubr.f32.gmra.mrb[0].mxu0 %v267
        %v427 = vpop.f32.mrb[0].mxu0
        %v428 = vadd.f32 0.0, %v427
        %v429 = vpop.f32.mrb[0].mxu0
        %v430 = vadd.f32 0.0, %v429
        %431 = vdwg.mxu0
        %v432 = vld [vmem:[%s0] sm:$0xff]
        %v433 = vld [vmem:[%s0 + $0x8] sm:$0xff]
        %v434 = vld [vmem:[%s209] sm:$0xf]
        %v436 = vlaneseq
        %v437 = vshrl.u32 %v436, 7
        %v438 = vsub.s32 0, %v437
        %v439 = vrot.slane %v434, %v438
        %v440 = vlaneseq
        %v441 = vshrl.u32 %v440, 7
        %v442 = vsub.s32 1, %v441
        %v443 = vrot.slane %v434, %v442
        %v444 = vlaneseq
        %v445 = vshrl.u32 %v444, 7
        %v446 = vsub.s32 2, %v445
        %v447 = vrot.slane %v434, %v446
        %v448 = vlaneseq
        %v449 = vshrl.u32 %v448, 7
        %v450 = vsub.s32 3, %v449
        %v451 = vrot.slane %v434, %v450
        %vm456 = vcmask 130048
        %v458 = vsel %vm456, %v432, 0
        %v461 = vsel %vm456, %v433, 0
        %463 = vmatprep.subr.mxu0 %v347
        %464 = vmatpush1.msra.mxu0 %v345
        %465 = vmatprep.subr.mxu0 %v353
        %466 = vmatpush1.msra.mxu0 %v351
        %467 = vmatprep.subr.mxu0 0.0
        %468 = vmatpush1.msra.mxu0 0.0
        %469 = vmatprep.subr.mxu0 0.0
        %470 = vmatpush1.msra.mxu0 0.0
        %471 = vmatprep.subr.mxu0 0.0
        %472 = vmatpush1.msra.mxu0 0.0
        %473 = vmatprep.subr.mxu0 0.0
        %474 = vmatpush1.msra.mxu0 0.0
        %475 = vmatprep.subr.mxu0 0.0
        %476 = vmatpush1.msra.mxu0 0.0
        %477 = vmatprep.subr.mxu0 0.0
        %478 = vmatpush1.msra.mxu0 0.0
        %479 = vmatprep.subr.mxu0 0.0
        %480 = vmatpush1.msra.mxu0 0.0
        %481 = vmatprep.subr.mxu0 0.0
        %482 = vmatpush1.msra.mxu0 0.0
        %483 = vmatprep.subr.mxu0 0.0
        %484 = vmatpush1.msra.mxu0 0.0
        %485 = vmatprep.subr.mxu0 0.0
        %486 = vmatpush1.msra.mxu0 0.0
        %487 = vmatprep.subr.mxu0 0.0
        %488 = vmatpush1.msra.mxu0 0.0
        %489 = vmatprep.subr.mxu0 0.0
        %490 = vmatpush1.msra.mxu0 0.0
        %491 = vmatprep.subr.mxu0 0.0
        %492 = vmatpush1.msra.mxu0 0.0
        %493 = vmatprep.subr.mxu0 0.0
        %494 = vmatpush1.msra.mxu0 0.0
        %495 = vmatprep.subr.mxu0 0.0
        %496 = vmatpush1.msra.mxu0 0.0
        %497 = vmatprep.subr.mxu0 0.0
        %498 = vmatpush1.msra.mxu0 0.0
        %499 = vmatprep.subr.mxu0 0.0
        %500 = vmatpush1.msra.mxu0 0.0
        %501 = vmatprep.subr.mxu0 0.0
        %502 = vmatpush1.msra.mxu0 0.0
        %503 = vmatprep.subr.mxu0 0.0
        %504 = vmatpush1.msra.mxu0 0.0
        %505 = vmatprep.subr.mxu0 0.0
        %506 = vmatpush1.msra.mxu0 0.0
        %507 = vmatprep.subr.mxu0 0.0
        %508 = vmatpush1.msra.mxu0 0.0
        %509 = vmatprep.subr.mxu0 0.0
        %510 = vmatpush1.msra.mxu0 0.0
        %511 = vmatprep.subr.mxu0 0.0
        %512 = vmatpush1.msra.mxu0 0.0
        %513 = vmatprep.subr.mxu0 0.0
        %514 = vmatpush1.msra.mxu0 0.0
        %515 = vmatprep.subr.mxu0 0.0
        %516 = vmatpush1.msra.mxu0 0.0
        %517 = vmatprep.subr.mxu0 0.0
        %518 = vmatpush1.msra.mxu0 0.0
        %519 = vmatprep.subr.mxu0 0.0
        %520 = vmatpush1.msra.mxu0 0.0
        %521 = vmatprep.subr.mxu0 0.0
        %522 = vmatpush1.msra.mxu0 0.0
        %523 = vmatprep.subr.mxu0 0.0
        %524 = vmatpush1.msra.mxu0 0.0
        %525 = vmatprep.subr.mxu0 0.0
        %526 = vmatpush1.msra.mxu0 0.0
        %527 = vmatprep.mubr.f32.mxu0 0.0
        %528 = vmatmul.mubr.f32.gmra.mrb[0].mxu0 %v458
        %v529 = vpop.f32.mrb[0].mxu0
        %v530 = vadd.f32 %v439, %v529
        %v531 = vpop.f32.mrb[0].mxu0
        %v532 = vadd.f32 %v443, %v531
        %533 = vmatprep.mubr.f32.mxu0 0.0
        %534 = vmatmul.mubr.f32.gmra.mrb[0].mxu0 %v461
        %v535 = vpop.f32.mrb[0].mxu0
        %v536 = vadd.f32 %v439, %v535
        %v537 = vpop.f32.mrb[0].mxu0
        %v538 = vadd.f32 %v443, %v537
        %539 = vdwg.mxu0
        %540 = vmatprep.subr.mxu0 %v424
        %541 = vmatpush1.msra.mxu0 %v422
        %542 = vmatprep.subr.mxu0 %v430
        %543 = vmatpush1.msra.mxu0 %v428
        %544 = vmatprep.subr.mxu0 0.0
        %545 = vmatpush1.msra.mxu0 0.0
        %546 = vmatprep.subr.mxu0 0.0
        %547 = vmatpush1.msra.mxu0 0.0
        %548 = vmatprep.subr.mxu0 0.0
        %549 = vmatpush1.msra.mxu0 0.0
        %550 = vmatprep.subr.mxu0 0.0
        %551 = vmatpush1.msra.mxu0 0.0
        %552 = vmatprep.subr.mxu0 0.0
        %553 = vmatpush1.msra.mxu0 0.0
        %554 = vmatprep.subr.mxu0 0.0
        %555 = vmatpush1.msra.mxu0 0.0
        %556 = vmatprep.subr.mxu0 0.0
        %557 = vmatpush1.msra.mxu0 0.0
        %558 = vmatprep.subr.mxu0 0.0
        %559 = vmatpush1.msra.mxu0 0.0
        %560 = vmatprep.subr.mxu0 0.0
        %561 = vmatpush1.msra.mxu0 0.0
        %562 = vmatprep.subr.mxu0 0.0
        %563 = vmatpush1.msra.mxu0 0.0
        %564 = vmatprep.subr.mxu0 0.0
        %565 = vmatpush1.msra.mxu0 0.0
        %566 = vmatprep.subr.mxu0 0.0
        %567 = vmatpush1.msra.mxu0 0.0
        %568 = vmatprep.subr.mxu0 0.0
        %569 = vmatpush1.msra.mxu0 0.0
        %570 = vmatprep.subr.mxu0 0.0
        %571 = vmatpush1.msra.mxu0 0.0
        %572 = vmatprep.subr.mxu0 0.0
        %573 = vmatpush1.msra.mxu0 0.0
        %574 = vmatprep.subr.mxu0 0.0
        %575 = vmatpush1.msra.mxu0 0.0
        %576 = vmatprep.subr.mxu0 0.0
        %577 = vmatpush1.msra.mxu0 0.0
        %578 = vmatprep.subr.mxu0 0.0
        %579 = vmatpush1.msra.mxu0 0.0
        %580 = vmatprep.subr.mxu0 0.0
        %581 = vmatpush1.msra.mxu0 0.0
        %582 = vmatprep.subr.mxu0 0.0
        %583 = vmatpush1.msra.mxu0 0.0
        %584 = vmatprep.subr.mxu0 0.0
        %585 = vmatpush1.msra.mxu0 0.0
        %586 = vmatprep.subr.mxu0 0.0
        %587 = vmatpush1.msra.mxu0 0.0
        %588 = vmatprep.subr.mxu0 0.0
        %589 = vmatpush1.msra.mxu0 0.0
        %590 = vmatprep.subr.mxu0 0.0
        %591 = vmatpush1.msra.mxu0 0.0
        %592 = vmatprep.subr.mxu0 0.0
        %593 = vmatpush1.msra.mxu0 0.0
        %594 = vmatprep.subr.mxu0 0.0
        %595 = vmatpush1.msra.mxu0 0.0
        %596 = vmatprep.subr.mxu0 0.0
        %597 = vmatpush1.msra.mxu0 0.0
        %598 = vmatprep.subr.mxu0 0.0
        %599 = vmatpush1.msra.mxu0 0.0
        %600 = vmatprep.subr.mxu0 0.0
        %601 = vmatpush1.msra.mxu0 0.0
        %602 = vmatprep.subr.mxu0 0.0
        %603 = vmatpush1.msra.mxu0 0.0
        %604 = vmatprep.mubr.f32.mxu0 0.0
        %605 = vmatmul.mubr.f32.gmra.mrb[0].mxu0 %v458
        %v606 = vpop.f32.mrb[0].mxu0
        %v607 = vadd.f32 %v447, %v606
        %v608 = vpop.f32.mrb[0].mxu0
        %v609 = vadd.f32 %v451, %v608
        %610 = vmatprep.mubr.f32.mxu0 0.0
        %611 = vmatmul.mubr.f32.gmra.mrb[0].mxu0 %v461
        %v612 = vpop.f32.mrb[0].mxu0
        %v613 = vadd.f32 %v447, %v612
        %v614 = vpop.f32.mrb[0].mxu0
        %v615 = vadd.f32 %v451, %v614
        %616 = vdwg.mxu0
        %617 = vst [vmem:[%s243] sm:$0xff] %v530
        %618 = vst [vmem:[%s243 + $0x8] sm:$0xff] %v532
        %619 = vst [vmem:[%s243 + $0x10] sm:$0xff] %v607
        %620 = vst [vmem:[%s243 + $0x18] sm:$0xff] %v609
        %621 = vst [vmem:[%s243 + $0x20] sm:$0xff] %v536
        %622 = vst [vmem:[%s243 + $0x28] sm:$0xff] %v538
        %623 = vst [vmem:[%s243 + $0x30] sm:$0xff] %v613
        %624 = vst [vmem:[%s243 + $0x38] sm:$0xff] %v615
        %s625 = sand.u32 %s128, 1
        %s626 = scalar_lea.sflag [#allocation4], %s625
        %s627 = sand.u32 %s128, 1
        %s628 = smul.addr %s627, 64
        %s629 = scalar_lea.vmem [#allocation5], %s628
        // Predicated region
        $region41: #{tpu_custom_call.1} parent=35 // pred_check
          %p630 = pneg %p138
        $region42: #{tpu_custom_call.1} parent=35 // pred_check_branch
          %632 = sbr.rel (%p630) target = $region44
        $region43: #{tpu_custom_call.1} parent=35 // pred_region
          %s634 = ssub.s32 1024, 1024
          %635 = vsyncadd %s626, %s634
          %s636 = smul.addr %s21, 8
          %s637 = smul.addr %s636, 128
          %s638 = scalar_lea.hbm %s4, %s637
          %s639 = sshll.u32 %s629, 4
          %s640 = int_to_ptr.vmem [resolvable:$true] %s639
          %645 = dma.vmem_to_hbm [thread:$0]  %s640, 1024, %s638, %s626, 512, 512, 32
        $region44: #{tpu_custom_call.1} parent=35 // pred_fallthru
          _
      $region36: #{tpu_custom_call.1} parent=5 // pred_fallthru
        _
      %p646 = scmp.le.s32.totalorder 2, %s16
      // Predicated region
      $region45: #{tpu_custom_call.1} parent=5 // pred_check
        %p647 = pneg %p646
      $region46: #{tpu_custom_call.1} parent=5 // pred_check_branch
        %649 = sbr.rel (%p647) target = $region48
      $region47: #{tpu_custom_call.1} parent=5 // pred_region
        %s650 = ssub.s32 %s16, 2
        // Predicated region
        $region49: #{tpu_custom_call.1} parent=47 // pred_check
          %p651 = pneg %p144
        $region50: #{tpu_custom_call.1} parent=47 // pred_check_branch
          %653 = sbr.rel (%p651) target = $region52
        $region51: #{tpu_custom_call.1} parent=47 // pred_region
          %s654 = sand.u32 %s129, 1
          %s655 = scalar_lea.sflag [#allocation4], %s654
          %s656 = sand.u32 %s129, 1
          %s657 = smul.addr %s656, 64
          %s658 = scalar_lea.vmem [#allocation5], %s657
          %659 = dma.done %s655, 1024
        $region52: #{tpu_custom_call.1} parent=47 // pred_fallthru
          _
      $region48: #{tpu_custom_call.1} parent=5 // pred_fallthru
        _
    $region6: #{tpu_custom_call.1} parent=1 // loop_footer
      %s20 = sadd.s32 1, %s16
    $region7: #{tpu_custom_call.1} parent=1 // loop_footer_branch
      %15 = sbr.rel target = $region3
    $region8: #{tpu_custom_call.1} parent=1 // loop_exit
      _
    %660 = vsyncpa [#allocation3], 1
    %s661 = scalar_lea.sflag [#allocation3], 1
    %662 = vsyncpa %s661, 1
    %663 = vsyncpa [#allocation4], 1
    %s664 = scalar_lea.sflag [#allocation4], 1
    %665 = vsyncpa %s664, 1

</llo_original>
